<compile_context>
chip_gen: v7x
topology: tpu7x:2x2x1
jax: 0.10.0
libtpu: 0.0.40
codegen_flags: <defaults>
</compile_context>

<pallas_src>
import jax
import jax.numpy as jnp
from jax.experimental import pallas as pl
from jax.experimental.pallas import tpu as pltpu


_POISON_SRC = 1.0e18    # padded source coords  -> distances ~1e36 (finite, huge)
_POISON_TGT = -1.0e18   # padded target coords  -> opposite sign so poison-vs-poison is huge
_ACC_INIT = 3.0e38      # running-min init (finite, sqrt stays finite)


def _make_chamfer_kernel(batch_block, lt_tile, n_src, dim):
    """grid = (B // batch_block, Lt_pad // lt_tile); last axis is the reduction axis."""

    def kernel(src_len_ref, tgt_len_ref, srcT_ref, tgt_ref, fwd_ref, bwd_ref):
        k = pl.program_id(1)
        nk = pl.num_programs(1)
        is_first = k == 0
        is_last = k == nk - 1
        b_base = pl.program_id(0) * batch_block

        # Small iotas only: (1, n_src) lane iota, (lt_tile, 1) sublane iota.
        src_idx = jax.lax.broadcasted_iota(jnp.int32, (1, n_src), 1)
        tgt_idx = jax.lax.broadcasted_iota(jnp.int32, (lt_tile, 1), 0) + k * lt_tile

        for bi in range(batch_block):                    # static unroll, amortizes grid overhead
            ls = src_len_ref[b_base + bi]                # valid source length (SMEM scalar)
            lt = tgt_len_ref[b_base + bi]                # valid target length (SMEM scalar)
            s_valid = src_idx < ls                       # (1, n_src)
            t_valid = tgt_idx < lt                       # (lt_tile, 1)

            # Poison padded points so they never win a min (no full-tile masks needed).
            d = None
            for c in range(dim):
                sc = jnp.where(s_valid, srcT_ref[bi, c:c + 1, :], _POISON_SRC)   # (1, n_src)
                tc = jnp.where(t_valid, tgt_ref[bi, :, c:c + 1], _POISON_TGT)    # (lt_tile, 1)
                diff = tc - sc                                                   # (lt_tile, n_src)
                d = diff * diff if d is None else d + diff * diff                # squared dist, VPU only

            # Forward: per source point, running min over target tiles; the resident
            # lane-dense output block doubles as the accumulator.
            tile_min = jnp.min(d, axis=0, keepdims=True)                         # (1, n_src)
            prev = jnp.where(is_first, jnp.full_like(tile_min, _ACC_INIT), fwd_ref[bi])
            run = jnp.minimum(prev, tile_min)
            done = jnp.where(s_valid & (lt > 0), jnp.sqrt(run), 0.0)
            fwd_ref[bi] = jnp.where(is_last, done, run)

            # Backward: per target point of this tile, min over all source points.
            bwd_min = jnp.min(d, axis=1, keepdims=True)                          # (lt_tile, 1)
            bwd_ref[bi] = jnp.where(t_valid & (ls > 0), jnp.sqrt(bwd_min), 0.0)

    return kernel


def chamfer_distance_pallas(source_cloud, target_cloud, source_mask, target_mask,
                            *, tile_budget_bytes=8 * 1024 * 1024, max_batch_block=8):
    """source_cloud: (B, Ls, D) f32, target_cloud: (B, Lt, D) f32,
    source_mask / target_mask: (B,) int valid lengths.
    Returns (chamfer_forward (B, Ls), chamfer_backward (B, Lt))."""
    source_cloud = jnp.asarray(source_cloud, jnp.float32)
    target_cloud = jnp.asarray(target_cloud, jnp.float32)
    B, Ls, D = source_cloud.shape
    Bt_, Lt, Dt_ = target_cloud.shape
    assert B == Bt_ and D == Dt_, "source/target batch or coord dims mismatch"
    src_len = jnp.asarray(source_mask, jnp.int32).reshape(B)
    tgt_len = jnp.asarray(target_mask, jnp.int32).reshape(B)

    # --- tile selection ------------------------------------------------------
    # The f32 distance tile (lt_tile, Ls) per folded batch is the dominant VMEM
    # consumer; keep batch_block * lt_tile * Ls * 4B under tile_budget_bytes
    # (default 8 MiB: safe for the scoped-VMEM limits of v5e/v6e and v7x's 64 MiB).
    if Ls * Lt * 4 <= tile_budget_bytes:
        lt_tile = Lt                                     # fits: no Lt tiling
    else:
        lt_tile = max(128, (tile_budget_bytes // (Ls * 4)) // 128 * 128)
    lt_pad = -(-Lt // lt_tile) * lt_tile
    if lt_pad != Lt:                                     # pad so lt_tile divides cleanly
        target_cloud = jnp.pad(target_cloud, ((0, 0), (0, lt_pad - Lt), (0, 0)))
    num_lt_tiles = lt_pad // lt_tile
    # TODO(synk): for source clouds far beyond ~16k points also tile Ls with a second
    # reduction axis; current canvas sizes (<= ~7.2k) fit the budget untiled.

    # Fold batches per grid step (amortize per-step overhead) but keep >= 2 batch
    # blocks when possible so both v7x TensorCores get parallel work.
    bt_cap = max(1, min(max_batch_block, (B + 1) // 2))
    batch_block = 1
    for cand in range(1, bt_cap + 1):
        if B % cand == 0 and cand * lt_tile * Ls * 4 <= tile_budget_bytes:
            batch_block = cand

    # Source points go on the lane axis inside the kernel -> (B, D, Ls).
    src_t = jnp.swapaxes(source_cloud, 1, 2)

    kernel = _make_chamfer_kernel(batch_block, lt_tile, Ls, D)
    fwd, bwd = pl.pallas_call(
        kernel,
        out_shape=(
            jax.ShapeDtypeStruct((B, 1, Ls), jnp.float32),       # forward (lane-dense)
            jax.ShapeDtypeStruct((B, lt_pad, 1), jnp.float32),   # backward
        ),
        grid_spec=pltpu.PrefetchScalarGridSpec(
            num_scalar_prefetch=2,
            grid=(B // batch_block, num_lt_tiles),
            in_specs=[
                pl.BlockSpec((batch_block, D, Ls), lambda b, k, sl, tl: (b, 0, 0)),
                pl.BlockSpec((batch_block, lt_tile, D), lambda b, k, sl, tl: (b, k, 0)),
            ],
            out_specs=[
                pl.BlockSpec((batch_block, 1, Ls), lambda b, k, sl, tl: (b, 0, 0)),
                pl.BlockSpec((batch_block, lt_tile, 1), lambda b, k, sl, tl: (b, k, 0)),
            ],
        ),
        compiler_params=pltpu.CompilerParams(
            dimension_semantics=("parallel", "arbitrary"),
            vmem_limit_bytes=min(64 * 1024 * 1024,
                                 max(16 * 1024 * 1024, 4 * tile_budget_bytes)),
        ),
    )(src_len, tgt_len, src_t, target_cloud)

    return fwd[:, 0, :], bwd[:, :Lt, 0]


class ChamferDistance:
    """JAX/Pallas port of the PyTorch ChamferDistance module (forward == _chamfer_distance)."""

    def __init__(self, H, W, resH, resW, normalize=False):
        if int(H) == 100:
            hs = jnp.linspace(0.0, H, int(H // resH + 1))
            ws = jnp.linspace(0.0, W, int(W // resW + 1))
        else:
            hs = jnp.linspace(0.0, H, int(H // resH))
            ws = jnp.linspace(0.0, W, int(W // resW))
        hh, ww = jnp.meshgrid(hs, ws, indexing="ij")
        self.canvas = jnp.stack([hh, ww], -1).reshape(-1, 2)
        self.inf = max(H, W)
        self.normalize = normalize

    def __call__(self, source_cloud, target_cloud, source_mask, target_mask):
        return self._chamfer_distance(source_cloud, target_cloud, source_mask, target_mask)

    @classmethod
    def _chamfer_distance(cls, source_cloud, target_cloud, source_mask, target_mask):
        return chamfer_distance_pallas(source_cloud, target_cloud, source_mask, target_mask)

    # TODO(synk): semantic_mask_chamfer_dist_cum_parallel / vec_cd_dist / instance_cd are
    # cumsum/gather glue around the same _chamfer_distance hot path; only that hot path
    # is implemented as a Pallas kernel.


def _reference(src, tgt, src_len, tgt_len):
    """Pure-JAX reference for validation (matches pytorch3d knn_points padding)."""
    d = jnp.sum((src[:, :, None, :] - tgt[:, None, :, :]) ** 2, -1)  # (B, Ls, Lt)
    Ls, Lt = src.shape[1], tgt.shape[1]
    col = jnp.arange(Lt)[None, None, :]
    row = jnp.arange(Ls)[None, :, None]
    big = jnp.float32(3.0e38)
    fwd = jnp.min(jnp.where(col < tgt_len[:, None, None], d, big), -1)
    fwd = jnp.where((jnp.arange(Ls)[None, :] < src_len[:, None])
                    & (tgt_len[:, None] > 0), fwd, 0.0)
    bwd = jnp.min(jnp.where(row < src_len[:, None, None], d, big), 1)
    bwd = jnp.where((jnp.arange(Lt)[None, :] < tgt_len[:, None])
                    & (src_len[:, None] > 0), bwd, 0.0)
    return jnp.sqrt(fwd), jnp.sqrt(bwd)


if __name__ == "__main__":
    key = jax.random.PRNGKey(0)
    k1, k2, k3, k4 = jax.random.split(key, 4)

    module = ChamferDistance(H=30, W=60, resH=0.5, resW=0.5)

    # Case 1: batch folding (batch_block=2), single target tile, ragged lengths.
    B, Ls, Lt, D = 4, 64, 48, 2
    src = jax.random.uniform(k1, (B, Ls, D), jnp.float32) * 30.0
    tgt = jax.random.uniform(k2, (B, Lt, D), jnp.float32) * 30.0
    src_len = jnp.array([Ls, 37, 1, Ls], dtype=jnp.int32)
    tgt_len = jnp.array([29, Lt, Lt, 5], dtype=jnp.int32)
    cd_f, cd_b = module(src, tgt, src_len, tgt_len)
    jax.block_until_ready((cd_f, cd_b))
    ref_f, ref_b = _reference(src, tgt, src_len, tgt_len)
    assert cd_f.shape == (B, Ls) and cd_b.shape == (B, Lt)
    assert jnp.allclose(cd_f, ref_f, atol=1e-4, rtol=1e-4)
    assert jnp.allclose(cd_b, ref_b, atol=1e-4, rtol=1e-4)

    # Case 2: force the Lt-tiled online-min path (tiny budget -> lt_tile=128, padded
    # target cloud, multi-step min accumulation) plus empty source / target clouds.
    B, Ls, Lt = 3, 40, 300
    src = jax.random.uniform(k3, (B, Ls, D), jnp.float32) * 30.0
    tgt = jax.random.uniform(k4, (B, Lt, D), jnp.float32) * 30.0
    src_len = jnp.array([Ls, 0, 17], dtype=jnp.int32)
    tgt_len = jnp.array([211, 123, 0], dtype=jnp.int32)
    cd_f, cd_b = chamfer_distance_pallas(src, tgt, src_len, tgt_len,
                                         tile_budget_bytes=128 * Ls * 4)
    jax.block_until_ready((cd_f, cd_b))
    ref_f, ref_b = _reference(src, tgt, src_len, tgt_len)
    assert cd_f.shape == (B, Ls) and cd_b.shape == (B, Lt)
    assert jnp.allclose(cd_f, ref_f, atol=1e-4, rtol=1e-4)
    assert jnp.allclose(cd_b, ref_b, atol=1e-4, rtol=1e-4)

    print("KERNEL_OK")
</pallas_src>

<mosaic_0001>
module attributes {stable_mosaic.version = 11 : i64} {
  func.func @kernel(%arg0: i32, %arg1: i32, %arg2: memref<4xi32, #tpu.memory_space<smem>>, %arg3: memref<4xi32, #tpu.memory_space<smem>>, %arg4: memref<2x2x64xf32, #tpu.memory_space<vmem>>, %arg5: memref<2x48x2xf32, #tpu.memory_space<vmem>>, %arg6: memref<2x1x64xf32, #tpu.memory_space<vmem>>, %arg7: memref<2x48x1xf32, #tpu.memory_space<vmem>>) attributes {dimension_semantics = [#tpu.dimension_semantics<parallel>, #tpu.dimension_semantics<arbitrary>], iteration_bounds = array<i64: 2, 1>, scalar_prefetch = 2 : i64, scratch_operands = 0 : i64, tpu.core_type = #tpu.core_type<tc>, window_params = [{transform_indices = @transform_0, window_bounds = array<i64: 2, 2, 64>}, {transform_indices = @transform_1, window_bounds = array<i64: 2, 48, 2>}, {transform_indices = @transform_2, window_bounds = array<i64: 2, 1, 64>}, {transform_indices = @transform_3, window_bounds = array<i64: 2, 48, 1>}]} {
    %c0_i32 = arith.constant 0 : i32
    %0 = arith.cmpi eq, %arg1, %c0_i32 : i32
    %c0_i32_0 = arith.constant 0 : i32
    %1 = arith.cmpi eq, %arg1, %c0_i32_0 : i32
    %c2_i32 = arith.constant 2 : i32
    %2 = arith.muli %arg0, %c2_i32 : i32
    %3 = tpu.iota {dimensions = array<i32: 1>} : vector<1x64xi32>
    %4 = tpu.iota {dimensions = array<i32: 0>} : vector<48x1xi32>
    %c48_i32 = arith.constant 48 : i32
    %5 = arith.muli %arg1, %c48_i32 : i32
    %6 = vector.broadcast %5 : i32 to vector<48x1xi32>
    %7 = arith.addi %4, %6 : vector<48x1xi32>
    %c0_i32_1 = arith.constant 0 : i32
    %8 = arith.addi %2, %c0_i32_1 : i32
    %9 = arith.index_cast %8 : i32 to index
    %10 = memref.load %arg2[%9] : memref<4xi32, #tpu.memory_space<smem>>
    %c0_i32_2 = arith.constant 0 : i32
    %11 = arith.addi %2, %c0_i32_2 : i32
    %12 = arith.index_cast %11 : i32 to index
    %13 = memref.load %arg3[%12] : memref<4xi32, #tpu.memory_space<smem>>
    %14 = vector.broadcast %10 : i32 to vector<1x64xi32>
    %15 = arith.cmpi slt, %3, %14 : vector<1x64xi32>
    %16 = vector.broadcast %13 : i32 to vector<48x1xi32>
    %17 = arith.cmpi slt, %7, %16 : vector<48x1xi32>
    %c0 = arith.constant 0 : index
    %c0_3 = arith.constant 0 : index
    %c0_4 = arith.constant 0 : index
    %18 = vector.load %arg4[%c0, %c0_3, %c0_4] : memref<2x2x64xf32, #tpu.memory_space<vmem>>, vector<1x1x64xf32>
    %19 = vector.shape_cast %18 : vector<1x1x64xf32> to vector<1x64xf32>
    %cst = arith.constant 9.99999984E+17 : f32
    %20 = vector.broadcast %cst : f32 to vector<1x64xf32>
    %21 = arith.select %15, %19, %20 : vector<1x64xi1>, vector<1x64xf32>
    %c0_5 = arith.constant 0 : index
    %c0_6 = arith.constant 0 : index
    %c0_7 = arith.constant 0 : index
    %22 = vector.load %arg5[%c0_5, %c0_6, %c0_7] : memref<2x48x2xf32, #tpu.memory_space<vmem>>, vector<1x48x1xf32>
    %23 = vector.shape_cast %22 : vector<1x48x1xf32> to vector<48x1xf32>
    %cst_8 = arith.constant -9.99999984E+17 : f32
    %24 = vector.broadcast %cst_8 : f32 to vector<48x1xf32>
    %25 = arith.select %17, %23, %24 : vector<48x1xi1>, vector<48x1xf32>
    %26 = vector.broadcast %25 : vector<48x1xf32> to vector<48x64xf32>
    %27 = vector.broadcast %21 : vector<1x64xf32> to vector<48x64xf32>
    %28 = arith.subf %26, %27 : vector<48x64xf32>
    %29 = arith.mulf %28, %28 : vector<48x64xf32>
    %c0_9 = arith.constant 0 : index
    %c1 = arith.constant 1 : index
    %c0_10 = arith.constant 0 : index
    %30 = vector.load %arg4[%c0_9, %c1, %c0_10] : memref<2x2x64xf32, #tpu.memory_space<vmem>>, vector<1x1x64xf32>
    %31 = vector.shape_cast %30 : vector<1x1x64xf32> to vector<1x64xf32>
    %cst_11 = arith.constant 9.99999984E+17 : f32
    %32 = vector.broadcast %cst_11 : f32 to vector<1x64xf32>
    %33 = arith.select %15, %31, %32 : vector<1x64xi1>, vector<1x64xf32>
    %c0_12 = arith.constant 0 : index
    %c0_13 = arith.constant 0 : index
    %c1_14 = arith.constant 1 : index
    %34 = vector.load %arg5[%c0_12, %c0_13, %c1_14] : memref<2x48x2xf32, #tpu.memory_space<vmem>>, vector<1x48x1xf32>
    %35 = vector.shape_cast %34 : vector<1x48x1xf32> to vector<48x1xf32>
    %cst_15 = arith.constant -9.99999984E+17 : f32
    %36 = vector.broadcast %cst_15 : f32 to vector<48x1xf32>
    %37 = arith.select %17, %35, %36 : vector<48x1xi1>, vector<48x1xf32>
    %38 = vector.broadcast %37 : vector<48x1xf32> to vector<48x64xf32>
    %39 = vector.broadcast %33 : vector<1x64xf32> to vector<48x64xf32>
    %40 = arith.subf %38, %39 : vector<48x64xf32>
    %41 = arith.mulf %40, %40 : vector<48x64xf32>
    %42 = arith.addf %29, %41 : vector<48x64xf32>
    %cst_16 = arith.constant dense<0x7F800000> : vector<64xf32>
    %43 = vector.multi_reduction <minimumf>, %42, %cst_16 [0] : vector<48x64xf32> to vector<64xf32>
    %44 = vector.shape_cast %43 : vector<64xf32> to vector<1x64xf32>
    %cst_17 = arith.constant 3.000000e+38 : f32
    %45 = vector.broadcast %cst_17 : f32 to vector<1x64xf32>
    %c0_18 = arith.constant 0 : index
    %c0_19 = arith.constant 0 : index
    %c0_20 = arith.constant 0 : index
    %46 = vector.load %arg6[%c0_18, %c0_19, %c0_20] : memref<2x1x64xf32, #tpu.memory_space<vmem>>, vector<1x1x64xf32>
    %47 = vector.shape_cast %46 : vector<1x1x64xf32> to vector<1x64xf32>
    %48 = arith.select %0, %45, %47 : vector<1x64xf32>
    %49 = arith.minimumf %48, %44 : vector<1x64xf32>
    %c0_i32_21 = arith.constant 0 : i32
    %50 = arith.cmpi sgt, %13, %c0_i32_21 : i32
    %51 = vector.broadcast %50 : i1 to vector<1x64xi1>
    %52 = arith.andi %15, %51 : vector<1x64xi1>
    %53 = math.sqrt %49 : vector<1x64xf32>
    %cst_22 = arith.constant 0.000000e+00 : f32
    %54 = vector.broadcast %cst_22 : f32 to vector<1x64xf32>
    %55 = arith.select %52, %53, %54 : vector<1x64xi1>, vector<1x64xf32>
    %56 = arith.select %1, %55, %49 : vector<1x64xf32>
    %c0_23 = arith.constant 0 : index
    %c0_24 = arith.constant 0 : index
    %c0_25 = arith.constant 0 : index
    %57 = vector.load %arg6[%c0_23, %c0_24, %c0_25] : memref<2x1x64xf32, #tpu.memory_space<vmem>>, vector<1x1x64xf32>
    %58 = vector.shape_cast %57 : vector<1x1x64xf32> to vector<1x64xf32>
    %59 = vector.shape_cast %56 : vector<1x64xf32> to vector<1x1x64xf32>
    tpu.vector_store %arg6[%c0_23, %c0_24, %c0_25], %59 {strides = array<i32>} : memref<2x1x64xf32, #tpu.memory_space<vmem>>, vector<1x1x64xf32>,
    %cst_26 = arith.constant dense<0x7F800000> : vector<48xf32>
    %60 = vector.multi_reduction <minimumf>, %42, %cst_26 [1] : vector<48x64xf32> to vector<48xf32>
    %61 = vector.shape_cast %60 : vector<48xf32> to vector<48x1xf32>
    %c0_i32_27 = arith.constant 0 : i32
    %62 = arith.cmpi sgt, %10, %c0_i32_27 : i32
    %63 = vector.broadcast %62 : i1 to vector<48x1xi1>
    %64 = arith.andi %17, %63 : vector<48x1xi1>
    %65 = math.sqrt %61 : vector<48x1xf32>
    %cst_28 = arith.constant 0.000000e+00 : f32
    %66 = vector.broadcast %cst_28 : f32 to vector<48x1xf32>
    %67 = arith.select %64, %65, %66 : vector<48x1xi1>, vector<48x1xf32>
    %c0_29 = arith.constant 0 : index
    %c0_30 = arith.constant 0 : index
    %c0_31 = arith.constant 0 : index
    %68 = vector.load %arg7[%c0_29, %c0_30, %c0_31] : memref<2x48x1xf32, #tpu.memory_space<vmem>>, vector<1x48x1xf32>
    %69 = vector.shape_cast %68 : vector<1x48x1xf32> to vector<48x1xf32>
    %70 = vector.shape_cast %67 : vector<48x1xf32> to vector<1x48x1xf32>
    tpu.vector_store %arg7[%c0_29, %c0_30, %c0_31], %70 {strides = array<i32>} : memref<2x48x1xf32, #tpu.memory_space<vmem>>, vector<1x48x1xf32>,
    %c1_i32 = arith.constant 1 : i32
    %71 = arith.addi %2, %c1_i32 : i32
    %72 = arith.index_cast %71 : i32 to index
    %73 = memref.load %arg2[%72] : memref<4xi32, #tpu.memory_space<smem>>
    %c1_i32_32 = arith.constant 1 : i32
    %74 = arith.addi %2, %c1_i32_32 : i32
    %75 = arith.index_cast %74 : i32 to index
    %76 = memref.load %arg3[%75] : memref<4xi32, #tpu.memory_space<smem>>
    %77 = vector.broadcast %73 : i32 to vector<1x64xi32>
    %78 = arith.cmpi slt, %3, %77 : vector<1x64xi32>
    %79 = vector.broadcast %76 : i32 to vector<48x1xi32>
    %80 = arith.cmpi slt, %7, %79 : vector<48x1xi32>
    %c1_33 = arith.constant 1 : index
    %c0_34 = arith.constant 0 : index
    %c0_35 = arith.constant 0 : index
    %81 = vector.load %arg4[%c1_33, %c0_34, %c0_35] : memref<2x2x64xf32, #tpu.memory_space<vmem>>, vector<1x1x64xf32>
    %82 = vector.shape_cast %81 : vector<1x1x64xf32> to vector<1x64xf32>
    %cst_36 = arith.constant 9.99999984E+17 : f32
    %83 = vector.broadcast %cst_36 : f32 to vector<1x64xf32>
    %84 = arith.select %78, %82, %83 : vector<1x64xi1>, vector<1x64xf32>
    %c1_37 = arith.constant 1 : index
    %c0_38 = arith.constant 0 : index
    %c0_39 = arith.constant 0 : index
    %85 = vector.load %arg5[%c1_37, %c0_38, %c0_39] : memref<2x48x2xf32, #tpu.memory_space<vmem>>, vector<1x48x1xf32>
    %86 = vector.shape_cast %85 : vector<1x48x1xf32> to vector<48x1xf32>
    %cst_40 = arith.constant -9.99999984E+17 : f32
    %87 = vector.broadcast %cst_40 : f32 to vector<48x1xf32>
    %88 = arith.select %80, %86, %87 : vector<48x1xi1>, vector<48x1xf32>
    %89 = vector.broadcast %88 : vector<48x1xf32> to vector<48x64xf32>
    %90 = vector.broadcast %84 : vector<1x64xf32> to vector<48x64xf32>
    %91 = arith.subf %89, %90 : vector<48x64xf32>
    %92 = arith.mulf %91, %91 : vector<48x64xf32>
    %c1_41 = arith.constant 1 : index
    %c1_42 = arith.constant 1 : index
    %c0_43 = arith.constant 0 : index
    %93 = vector.load %arg4[%c1_41, %c1_42, %c0_43] : memref<2x2x64xf32, #tpu.memory_space<vmem>>, vector<1x1x64xf32>
    %94 = vector.shape_cast %93 : vector<1x1x64xf32> to vector<1x64xf32>
    %cst_44 = arith.constant 9.99999984E+17 : f32
    %95 = vector.broadcast %cst_44 : f32 to vector<1x64xf32>
    %96 = arith.select %78, %94, %95 : vector<1x64xi1>, vector<1x64xf32>
    %c1_45 = arith.constant 1 : index
    %c0_46 = arith.constant 0 : index
    %c1_47 = arith.constant 1 : index
    %97 = vector.load %arg5[%c1_45, %c0_46, %c1_47] : memref<2x48x2xf32, #tpu.memory_space<vmem>>, vector<1x48x1xf32>
    %98 = vector.shape_cast %97 : vector<1x48x1xf32> to vector<48x1xf32>
    %cst_48 = arith.constant -9.99999984E+17 : f32
    %99 = vector.broadcast %cst_48 : f32 to vector<48x1xf32>
    %100 = arith.select %80, %98, %99 : vector<48x1xi1>, vector<48x1xf32>
    %101 = vector.broadcast %100 : vector<48x1xf32> to vector<48x64xf32>
    %102 = vector.broadcast %96 : vector<1x64xf32> to vector<48x64xf32>
    %103 = arith.subf %101, %102 : vector<48x64xf32>
    %104 = arith.mulf %103, %103 : vector<48x64xf32>
    %105 = arith.addf %92, %104 : vector<48x64xf32>
    %cst_49 = arith.constant dense<0x7F800000> : vector<64xf32>
    %106 = vector.multi_reduction <minimumf>, %105, %cst_49 [0] : vector<48x64xf32> to vector<64xf32>
    %107 = vector.shape_cast %106 : vector<64xf32> to vector<1x64xf32>
    %cst_50 = arith.constant 3.000000e+38 : f32
    %108 = vector.broadcast %cst_50 : f32 to vector<1x64xf32>
    %c1_51 = arith.constant 1 : index
    %c0_52 = arith.constant 0 : index
    %c0_53 = arith.constant 0 : index
    %109 = vector.load %arg6[%c1_51, %c0_52, %c0_53] : memref<2x1x64xf32, #tpu.memory_space<vmem>>, vector<1x1x64xf32>
    %110 = vector.shape_cast %109 : vector<1x1x64xf32> to vector<1x64xf32>
    %111 = arith.select %0, %108, %110 : vector<1x64xf32>
    %112 = arith.minimumf %111, %107 : vector<1x64xf32>
    %c0_i32_54 = arith.constant 0 : i32
    %113 = arith.cmpi sgt, %76, %c0_i32_54 : i32
    %114 = vector.broadcast %113 : i1 to vector<1x64xi1>
    %115 = arith.andi %78, %114 : vector<1x64xi1>
    %116 = math.sqrt %112 : vector<1x64xf32>
    %cst_55 = arith.constant 0.000000e+00 : f32
    %117 = vector.broadcast %cst_55 : f32 to vector<1x64xf32>
    %118 = arith.select %115, %116, %117 : vector<1x64xi1>, vector<1x64xf32>
    %119 = arith.select %1, %118, %112 : vector<1x64xf32>
    %c1_56 = arith.constant 1 : index
    %c0_57 = arith.constant 0 : index
    %c0_58 = arith.constant 0 : index
    %120 = vector.load %arg6[%c1_56, %c0_57, %c0_58] : memref<2x1x64xf32, #tpu.memory_space<vmem>>, vector<1x1x64xf32>
    %121 = vector.shape_cast %120 : vector<1x1x64xf32> to vector<1x64xf32>
    %122 = vector.shape_cast %119 : vector<1x64xf32> to vector<1x1x64xf32>
    tpu.vector_store %arg6[%c1_56, %c0_57, %c0_58], %122 {strides = array<i32>} : memref<2x1x64xf32, #tpu.memory_space<vmem>>, vector<1x1x64xf32>,
    %cst_59 = arith.constant dense<0x7F800000> : vector<48xf32>
    %123 = vector.multi_reduction <minimumf>, %105, %cst_59 [1] : vector<48x64xf32> to vector<48xf32>
    %124 = vector.shape_cast %123 : vector<48xf32> to vector<48x1xf32>
    %c0_i32_60 = arith.constant 0 : i32
    %125 = arith.cmpi sgt, %73, %c0_i32_60 : i32
    %126 = vector.broadcast %125 : i1 to vector<48x1xi1>
    %127 = arith.andi %80, %126 : vector<48x1xi1>
    %128 = math.sqrt %124 : vector<48x1xf32>
    %cst_61 = arith.constant 0.000000e+00 : f32
    %129 = vector.broadcast %cst_61 : f32 to vector<48x1xf32>
    %130 = arith.select %127, %128, %129 : vector<48x1xi1>, vector<48x1xf32>
    %c1_62 = arith.constant 1 : index
    %c0_63 = arith.constant 0 : index
    %c0_64 = arith.constant 0 : index
    %131 = vector.load %arg7[%c1_62, %c0_63, %c0_64] : memref<2x48x1xf32, #tpu.memory_space<vmem>>, vector<1x48x1xf32>
    %132 = vector.shape_cast %131 : vector<1x48x1xf32> to vector<48x1xf32>
    %133 = vector.shape_cast %130 : vector<48x1xf32> to vector<1x48x1xf32>
    tpu.vector_store %arg7[%c1_62, %c0_63, %c0_64], %133 {strides = array<i32>} : memref<2x48x1xf32, #tpu.memory_space<vmem>>, vector<1x48x1xf32>,
    return
  }
  func.func @transform_0(%arg0: i32, %arg1: i32, %arg2: memref<4xi32, #tpu.memory_space<smem>>, %arg3: memref<4xi32, #tpu.memory_space<smem>>) -> (i32, i32, i32) {
    %c0_i32 = arith.constant 0 : i32
    %c0_i32_0 = arith.constant 0 : i32
    %c0_i32_1 = arith.constant 0 : i32
    return %arg0, %c0_i32, %c0_i32_0 : i32, i32, i32
  }
  func.func @transform_1(%arg0: i32, %arg1: i32, %arg2: memref<4xi32, #tpu.memory_space<smem>>, %arg3: memref<4xi32, #tpu.memory_space<smem>>) -> (i32, i32, i32) {
    %c0_i32 = arith.constant 0 : i32
    %c0_i32_0 = arith.constant 0 : i32
    return %arg0, %arg1, %c0_i32 : i32, i32, i32
  }
  func.func @transform_2(%arg0: i32, %arg1: i32, %arg2: memref<4xi32, #tpu.memory_space<smem>>, %arg3: memref<4xi32, #tpu.memory_space<smem>>) -> (i32, i32, i32) {
    %c0_i32 = arith.constant 0 : i32
    %c0_i32_0 = arith.constant 0 : i32
    %c0_i32_1 = arith.constant 0 : i32
    return %arg0, %c0_i32, %c0_i32_0 : i32, i32, i32
  }
  func.func @transform_3(%arg0: i32, %arg1: i32, %arg2: memref<4xi32, #tpu.memory_space<smem>>, %arg3: memref<4xi32, #tpu.memory_space<smem>>) -> (i32, i32, i32) {
    %c0_i32 = arith.constant 0 : i32
    %c0_i32_0 = arith.constant 0 : i32
    return %arg0, %arg1, %c0_i32 : i32, i32, i32
  }
}

</mosaic_0001>

<llo_original>
// kernel: tpu_custom_call.1
$region0: #{tpu_custom_call.1}
  #allocation0 [shape = 'u32[]', space=smem, size = 0x4, offset = 0x4, fixed_abs, tag = 'smem constant byte address 0x4 - core index']
  #allocation1 [shape = 'u32[144,128]{1,0:T(1,128)}', space=vmem, size = 0x12000, scoped, tag = 'internal scratch']
  #allocation2 [shape = 's32[1]{0}', space=sflag, size = 0x4, scoped, tag = 'scoped memory for tpu_custom_call.1']
  #allocation3 [shape = 'u8[512]{0}', space=smem, size = 0x200, scoped, tag = 'prefetched SMEM operand 0']
  #allocation4 [shape = 'u8[512]{0}', space=smem, size = 0x200, scoped, tag = 'prefetched SMEM operand 1']
  %s0 = inlined_call_operand.vmem [shape: s32[4], index: 0, kind: input, shape index: {}]
  %s1 = inlined_call_operand.vmem [shape: s32[4], index: 1, kind: input, shape index: {}]
  %s2 = inlined_call_operand.vmem [shape: f32[4,2,64], index: 2, kind: input, shape index: {}]
  %s3 = inlined_call_operand.vmem [shape: f32[4,48,2], index: 3, kind: input, shape index: {}]
  %s4 = inlined_call_operand.hbm [shape: f32[4,1,64], index: 4, kind: output, shape index: {0}]
  %s5 = inlined_call_operand.vmem [shape: f32[4,48,1], index: 5, kind: output, shape index: {1}]
  %6 = xla_tuple %s4, %s5
  %s7 = sld [smem:[#allocation0]]
  $region49: #{tpu_custom_call.1} parent=0
    _
  %s9 = ssub.s32 1, %s7
  %s10 = scalar_select 0, %s9, %s7
  %s11 = sshll.u32 %s0, 4
  %s12 = int_to_ptr.vmem [resolvable:$true] %s11
  %14 = dma.vmem_to_smem %s12, 16, [#allocation3], [#allocation2]
  %s15 = sshll.u32 %s1, 4
  %s16 = int_to_ptr.vmem [resolvable:$true] %s15
  %18 = dma.vmem_to_smem %s16, 16, [#allocation4], [#allocation2]
  %19 = dma.done [#allocation2], 32
  %20 = sfence
  $region1: #{tpu_custom_call.1} parent=0
    #allocation5 [shape = 'u8[2048]{0}', space=vmem, size = 0x800, scoped, tag = 'output window, operand 0']
    #allocation6 [shape = 's32[2]{0}', space=sflag, size = 0x8, scoped, tag = 'scoped memory for tpu_custom_call.1']
    %21 = vsyncpa [#allocation6], 0
    %s22 = scalar_lea.sflag [#allocation6], 1
    %23 = vsyncpa %s22, 0
    loop: start=0, step=1, limit=4
    $region2: #{tpu_custom_call.1} parent=1 // loop_pre_header
      _
    $region3: #{tpu_custom_call.1} parent=1 // loop_header
      %s25 = sphi 0, %s29
      %p26 = scmp.ge.s32.totalorder %s25, 4
      %s32 = sphi 0, %s44
      %s33 = sphi 0, %s40
      %s34 = sphi 0, %s32
      %s35 = sphi 0, %s33
      %s36 = sphi 0, %s34
      %s37 = sphi 0, %s35
      %s47 = sphi 0, %s49
      %s50 = sphi 0, %s47
      %s51 = sphi 0, %s50
      %s67 = sphi 0, %s51
      %s75 = sphi 0, %s77
      %s78 = sphi 0, %s75
      %s79 = sphi 0, %s78
      %s95 = sphi 0, %s79
      %s101 = sphi 0, %s103
      %s104 = sphi 0, %s101
      %s105 = sphi 0, %s104
      %s121 = sphi 0, %s105
      %s129 = sphi 0, %s131
      %s132 = sphi 0, %s129
      %s133 = sphi 0, %s132
      %s149 = sphi 0, %s133
    $region4: #{tpu_custom_call.1} parent=1 // loop_header_branch
      %28 = sbr.rel (%p26) target = $region8
    $region5: #{tpu_custom_call.1} parent=1 // loop_body
      %s30 = ssub.s32 %s25, 1
      %s31 = ssub.s32 %s25, 2
      %s38 = sadd.s32 1, %s33
      %p39 = scmp.ge.s32.totalorder %s38, 1
      %s40 = scalar_select %p39, 0, %s38
      %s41 = sadd.s32 1, %s32
      %s42 = scalar_select %p39, %s41, %s32
      %p43 = scmp.ge.s32.totalorder %s42, 2
      %s44 = scalar_select %p43, 0, %s42
      %s45 = ssub.s32 %s32, %s44
      %p46 = scmp.eq.s32.totalorder %s45, 0
      %s48 = sadd.s32 %s47, 1
      %s49 = scalar_select %p46, %s47, %s48
      %p52 = pneg %p46
      %p53 = scmp.eq.s32.totalorder %s25, 1
      %p54 = por %p52, %p53
      %p55 = scmp.ne.s32.totalorder %s47, %s50
      %p56 = scmp.eq.s32.totalorder %s25, 0
      %p57 = por %p55, %p56
      %p58 = scmp.ne.s32.totalorder %s47, %s50
      %p59 = scmp.eq.s32.totalorder %s30, 1
      %p60 = por %p58, %p59
      %p61 = scmp.ne.s32.totalorder %s50, %s51
      %p62 = scmp.eq.s32.totalorder %s30, 0
      %p63 = por %p61, %p62
      %p64 = scmp.ne.s32.totalorder %s50, %s51
      %p65 = scmp.eq.s32.totalorder %s31, 1
      %p66 = por %p64, %p65
      %p68 = scmp.ne.s32.totalorder %s51, %s67
      %p69 = scmp.eq.s32.totalorder %s31, 0
      %p70 = por %p68, %p69
      %s71 = ssub.s32 %s32, %s44
      %s72 = ssub.s32 %s33, %s40
      %s73 = sor.u32 %s71, %s72
      %p74 = scmp.eq.s32.totalorder %s73, 0
      %s76 = sadd.s32 %s75, 1
      %s77 = scalar_select %p74, %s75, %s76
      %p80 = pneg %p74
      %p81 = scmp.eq.s32.totalorder %s25, 1
      %p82 = por %p80, %p81
      %p83 = scmp.ne.s32.totalorder %s75, %s78
      %p84 = scmp.eq.s32.totalorder %s25, 0
      %p85 = por %p83, %p84
      %p86 = scmp.ne.s32.totalorder %s75, %s78
      %p87 = scmp.eq.s32.totalorder %s30, 1
      %p88 = por %p86, %p87
      %p89 = scmp.ne.s32.totalorder %s78, %s79
      %p90 = scmp.eq.s32.totalorder %s30, 0
      %p91 = por %p89, %p90
      %p92 = scmp.ne.s32.totalorder %s78, %s79
      %p93 = scmp.eq.s32.totalorder %s31, 1
      %p94 = por %p92, %p93
      %p96 = scmp.ne.s32.totalorder %s79, %s95
      %p97 = scmp.eq.s32.totalorder %s31, 0
      %p98 = por %p96, %p97
      %s99 = ssub.s32 %s32, %s44
      %p100 = scmp.eq.s32.totalorder %s99, 0
      %s102 = sadd.s32 %s101, 1
      %s103 = scalar_select %p100, %s101, %s102
      %p106 = pneg %p100
      %p107 = scmp.eq.s32.totalorder %s25, 1
      %p108 = por %p106, %p107
      %p109 = scmp.ne.s32.totalorder %s101, %s104
      %p110 = scmp.eq.s32.totalorder %s25, 0
      %p111 = por %p109, %p110
      %p112 = scmp.ne.s32.totalorder %s101, %s104
      %p113 = scmp.eq.s32.totalorder %s30, 1
      %p114 = por %p112, %p113
      %p115 = scmp.ne.s32.totalorder %s104, %s105
      %p116 = scmp.eq.s32.totalorder %s30, 0
      %p117 = por %p115, %p116
      %p118 = scmp.ne.s32.totalorder %s104, %s105
      %p119 = scmp.eq.s32.totalorder %s31, 1
      %p120 = por %p118, %p119
      %p122 = scmp.ne.s32.totalorder %s105, %s121
      %p123 = scmp.eq.s32.totalorder %s31, 0
      %p124 = por %p122, %p123
      %s125 = ssub.s32 %s32, %s44
      %s126 = ssub.s32 %s33, %s40
      %s127 = sor.u32 %s125, %s126
      %p128 = scmp.eq.s32.totalorder %s127, 0
      %s130 = sadd.s32 %s129, 1
      %s131 = scalar_select %p128, %s129, %s130
      %p134 = pneg %p128
      %p135 = scmp.eq.s32.totalorder %s25, 1
      %p136 = por %p134, %p135
      %p137 = scmp.ne.s32.totalorder %s129, %s132
      %p138 = scmp.eq.s32.totalorder %s25, 0
      %p139 = por %p137, %p138
      %p140 = scmp.ne.s32.totalorder %s129, %s132
      %p141 = scmp.eq.s32.totalorder %s30, 1
      %p142 = por %p140, %p141
      %p143 = scmp.ne.s32.totalorder %s132, %s133
      %p144 = scmp.eq.s32.totalorder %s30, 0
      %p145 = por %p143, %p144
      %p146 = scmp.ne.s32.totalorder %s132, %s133
      %p147 = scmp.eq.s32.totalorder %s31, 1
      %p148 = por %p146, %p147
      %p150 = scmp.ne.s32.totalorder %s133, %s149
      %p151 = scmp.eq.s32.totalorder %s31, 0
      %p152 = por %p150, %p151
      %p153 = scmp.le.s32.totalorder 1, %s25
      %p154 = scmp.lt.s32.totalorder %s25, 3
      %p155 = pnand %p153, %p154
      %p156 = pneg %p155
      // Predicated region
      $region9: #{tpu_custom_call.1} parent=5 // pred_check
        _
      $region10: #{tpu_custom_call.1} parent=5 // pred_check_branch
        %158 = sbr.rel (%p155) target = $region12
      $region11: #{tpu_custom_call.1} parent=5 // pred_region
        %s159 = ssub.s32 %s25, 1
      $region12: #{tpu_custom_call.1} parent=5 // pred_fallthru
        _
      %p160 = scmp.lt.s32.totalorder %s25, 2
      // Predicated region
      $region13: #{tpu_custom_call.1} parent=5 // pred_check
        %p161 = pneg %p160
      $region14: #{tpu_custom_call.1} parent=5 // pred_check_branch
        %163 = sbr.rel (%p161) target = $region16
      $region15: #{tpu_custom_call.1} parent=5 // pred_region
        // Predicated region
        $region17: #{tpu_custom_call.1} parent=15 // pred_check
          %p164 = pneg %p57
        $region18: #{tpu_custom_call.1} parent=15 // pred_check_branch
          %166 = sbr.rel (%p164) target = $region20
        $region19: #{tpu_custom_call.1} parent=15 // pred_region
          %s167 = smul.u32 2, %s32
          %p168 = scmp.lt.s32.totalorder %s167, 3
          %s169 = scalar_select %p168, %s167, 3
          %s170 = smul.addr %s169, 2
          %s171 = scalar_lea.vmem %s2, %s170
          %s172 = smul.u32 2, %s32
        $region20: #{tpu_custom_call.1} parent=15 // pred_fallthru
          _
        // Predicated region
        $region21: #{tpu_custom_call.1} parent=15 // pred_check
          %p173 = pneg %p85
        $region22: #{tpu_custom_call.1} parent=15 // pred_check_branch
          %175 = sbr.rel (%p173) target = $region24
        $region23: #{tpu_custom_call.1} parent=15 // pred_region
          %s176 = smul.u32 2, %s32
          %s177 = smul.u32 6, %s33
          %p178 = scmp.lt.s32.totalorder %s176, 3
          %s179 = scalar_select %p178, %s176, 3
          %p180 = scmp.lt.s32.totalorder %s177, 5
          %s181 = scalar_select %p180, %s177, 5
          %s182 = smul.addr %s179, 6
          %s183 = sadd.s32 %s181, %s182
          %s184 = smul.addr %s183, 8
          %s185 = scalar_lea.vmem %s3, %s184
          %s186 = smul.u32 2, %s32
          %s187 = smul.u32 6, %s33
        $region24: #{tpu_custom_call.1} parent=15 // pred_fallthru
          _
      $region16: #{tpu_custom_call.1} parent=5 // pred_fallthru
        _
      %p188 = scmp.le.s32.totalorder 1, %s25
      %p189 = scmp.lt.s32.totalorder %s25, 3
      %p190 = pnand %p188, %p189
      %p191 = pneg %p190
      // Predicated region
      $region25: #{tpu_custom_call.1} parent=5 // pred_check
        _
      $region26: #{tpu_custom_call.1} parent=5 // pred_check_branch
        %193 = sbr.rel (%p190) target = $region28
      $region27: #{tpu_custom_call.1} parent=5 // pred_region
        %s194 = ssub.s32 %s25, 1
        %s195 = smul.u32 2, %s34
        %p196 = scmp.lt.s32.totalorder %s195, 3
        %s197 = scalar_select %p196, %s195, 3
        %s198 = smul.addr %s197, 2
        %s199 = scalar_lea.vmem %s2, %s198
        %p200 = pneg %p63
        %p201 = pneg %p60
        %s202 = smul.u32 2, %s34
        %s203 = smul.u32 6, %s35
        %p204 = scmp.lt.s32.totalorder %s202, 3
        %s205 = scalar_select %p204, %s202, 3
        %p206 = scmp.lt.s32.totalorder %s203, 5
        %s207 = scalar_select %p206, %s203, 5
        %s208 = smul.addr %s205, 6
        %s209 = sadd.s32 %s207, %s208
        %s210 = smul.addr %s209, 8
        %s211 = scalar_lea.vmem %s3, %s210
        %p212 = pneg %p91
        %p213 = pneg %p88
        %p214 = pneg %p117
        %p215 = pneg %p114
        %s216 = sand.u32 %s104, 1
        %s217 = scalar_lea.sflag [#allocation6], %s216
        %s218 = sand.u32 %s104, 1
        %s219 = smul.addr %s218, 2
        %s220 = scalar_lea.vmem [#allocation5], %s219
        %p221 = pneg %p145
        %p222 = pneg %p142
        %s223 = smul.u32 2, %s34
        %s224 = smul.u32 6, %s35
        %p225 = scmp.lt.s32.totalorder %s223, 3
        %s226 = scalar_select %p225, %s223, 3
        %p227 = scmp.lt.s32.totalorder %s224, 5
        %s228 = scalar_select %p227, %s224, 5
        %s229 = smul.addr %s226, 6
        %s230 = sadd.s32 %s228, %s229
        %s231 = smul.addr %s230, 8
        %s232 = scalar_lea.vmem %s5, %s231
        %s233 = smul.u32 2, %s34
        %p234 = scmp.lt.s32.totalorder %s233, 3
        %s235 = scalar_select %p234, %s233, 3
        %s236 = smul.addr %s235, 2
        %s237 = scalar_lea.vmem %s2, %s236
        %s238 = smul.u32 2, %s34
        %s239 = smul.u32 2, %s34
        %s240 = smul.u32 6, %s35
        %p241 = scmp.lt.s32.totalorder %s239, 3
        %s242 = scalar_select %p241, %s239, 3
        %p243 = scmp.lt.s32.totalorder %s240, 5
        %s244 = scalar_select %p243, %s240, 5
        %s245 = smul.addr %s242, 6
        %s246 = sadd.s32 %s244, %s245
        %s247 = smul.addr %s246, 8
        %s248 = scalar_lea.vmem %s3, %s247
        %s249 = smul.u32 2, %s34
        %s250 = smul.u32 6, %s35
        %s251 = smul.u32 2, %s34
        %s252 = smul.u32 2, %s34
        %s253 = smul.u32 6, %s35
        %p254 = scmp.lt.s32.totalorder %s252, 3
        %s255 = scalar_select %p254, %s252, 3
        %p256 = scmp.lt.s32.totalorder %s253, 5
        %s257 = scalar_select %p256, %s253, 5
        %s258 = smul.addr %s255, 6
        %s259 = sadd.s32 %s257, %s258
        %s260 = smul.addr %s259, 8
        %s261 = scalar_lea.vmem %s5, %s260
        %s262 = smul.u32 2, %s34
        %s263 = smul.u32 6, %s35
        %p264 = scmp.eq.s32.totalorder %s35, 0
        %s265 = smul.u32 %s34, 2
        %v266 = vlaneseq
        %v267 = vand.u32 %v266, 127
        %v268 = vlaneseq
        %v269 = vshrl.u32 %v268, 7
        %v270 = vadd.s32 %v269, 8
        %v271 = vadd.s32 %v269, 16
        %v272 = vadd.s32 %v269, 24
        %v273 = vadd.s32 %v269, 32
        %v274 = vadd.s32 %v269, 40
        %s275 = smul.u32 %s35, 48
        %v276 = vstv %s275
        %v277 = vadd.s32 %v269, %v276
        %v278 = vadd.s32 %v270, %v276
        %v279 = vadd.s32 %v271, %v276
        %v280 = vadd.s32 %v272, %v276
        %v281 = vadd.s32 %v273, %v276
        %v282 = vadd.s32 %v274, %v276
        %s283 = sld [smem:[#allocation3 + %s265]]
        %s284 = sld [smem:[#allocation4 + %s265]]
        %v285 = vstv %s283
        %vm286 = vcmp.lt.s32.totalorder %v267, %v285
        %v287 = vstv %s284
        %vm288 = vcmp.lt.s32.totalorder %v277, %v287
        %vm289 = vcmp.lt.s32.totalorder %v278, %v287
        %vm290 = vcmp.lt.s32.totalorder %v279, %v287
        %vm291 = vcmp.lt.s32.totalorder %v280, %v287
        %vm292 = vcmp.lt.s32.totalorder %v281, %v287
        %vm293 = vcmp.lt.s32.totalorder %v282, %v287
        %v294 = vld [vmem:[%s237] sm:$0x1]
        %v295 = vsel %vm286, %v294, 1e+18
        %v296 = vld [vmem:[%s248] sm:$0xff]
        %v297 = vld [vmem:[%s248 + $0x8] sm:$0xff]
        %v298 = vld [vmem:[%s248 + $0x10] sm:$0xff]
        %v299 = vld [vmem:[%s248 + $0x18] sm:$0xff]
        %v300 = vld [vmem:[%s248 + $0x20] sm:$0xff]
        %v301 = vld [vmem:[%s248 + $0x28] sm:$0xff]
        %v302 = vsel %vm288, %v296, -1e+18
        %v303 = vsel %vm289, %v297, -1e+18
        %v304 = vsel %vm290, %v298, -1e+18
        %v305 = vsel %vm291, %v299, -1e+18
        %v306 = vsel %vm292, %v300, -1e+18
        %v307 = vsel %vm293, %v301, -1e+18
        %309 = vset.pattern.permute.xlu0 0
        %310 = vperm.xlu0 %309, %v302
        %v311 = vpop.permute.xlu0 %310
        %314 = vset.pattern.permute.xlu0 0
        %315 = vperm.xlu0 %314, %v303
        %v316 = vpop.permute.xlu0 %315
        %319 = vset.pattern.permute.xlu0 0
        %320 = vperm.xlu0 %319, %v304
        %v321 = vpop.permute.xlu0 %320
        %324 = vset.pattern.permute.xlu0 0
        %325 = vperm.xlu0 %324, %v305
        %v326 = vpop.permute.xlu0 %325
        %329 = vset.pattern.permute.xlu0 0
        %330 = vperm.xlu0 %329, %v306
        %v331 = vpop.permute.xlu0 %330
        %334 = vset.pattern.permute.xlu0 0
        %335 = vperm.xlu0 %334, %v307
        %v336 = vpop.permute.xlu0 %335
        %v338 = vlaneseq
        %v339 = vshrl.u32 %v338, 7
        %v340 = vsub.s32 0, %v339
        %v341 = vrot.slane %v295, %v340
        %v342 = vsub.f32 %v311, %v341
        %v343 = vsub.f32 %v316, %v341
        %v344 = vsub.f32 %v321, %v341
        %v345 = vsub.f32 %v326, %v341
        %v346 = vsub.f32 %v331, %v341
        %v347 = vsub.f32 %v336, %v341
        %v348 = vmul.f32 %v342, %v342
        %v349 = vmul.f32 %v343, %v343
        %v350 = vmul.f32 %v344, %v344
        %v351 = vmul.f32 %v345, %v345
        %v352 = vmul.f32 %v346, %v346
        %v353 = vmul.f32 %v347, %v347
        %v354 = vld [vmem:[%s237 + $0x1] sm:$0x1]
        %v355 = vsel %vm286, %v354, 1e+18
        %356 = vset.pattern.permute.xlu0 1
        %357 = vperm.xlu0 %356, %v302
        %v358 = vpop.permute.xlu0 %357
        %360 = vset.pattern.permute.xlu0 1
        %361 = vperm.xlu0 %360, %v303
        %v362 = vpop.permute.xlu0 %361
        %364 = vset.pattern.permute.xlu0 1
        %365 = vperm.xlu0 %364, %v304
        %v366 = vpop.permute.xlu0 %365
        %368 = vset.pattern.permute.xlu0 1
        %369 = vperm.xlu0 %368, %v305
        %v370 = vpop.permute.xlu0 %369
        %372 = vset.pattern.permute.xlu0 1
        %373 = vperm.xlu0 %372, %v306
        %v374 = vpop.permute.xlu0 %373
        %376 = vset.pattern.permute.xlu0 1
        %377 = vperm.xlu0 %376, %v307
        %v378 = vpop.permute.xlu0 %377
        %v380 = vlaneseq
        %v381 = vshrl.u32 %v380, 7
        %v382 = vsub.s32 0, %v381
        %v383 = vrot.slane %v355, %v382
        %v384 = vsub.f32 %v358, %v383
        %v385 = vsub.f32 %v362, %v383
        %v386 = vsub.f32 %v366, %v383
        %v387 = vsub.f32 %v370, %v383
        %v388 = vsub.f32 %v374, %v383
        %v389 = vsub.f32 %v378, %v383
        %v390 = vmul.f32 %v384, %v384
        %v391 = vmul.f32 %v385, %v385
        %v392 = vmul.f32 %v386, %v386
        %v393 = vmul.f32 %v387, %v387
        %v394 = vmul.f32 %v388, %v388
        %v395 = vmul.f32 %v389, %v389
        %v396 = vadd.f32 %v348, %v390
        %v397 = vadd.f32 %v349, %v391
        %v398 = vadd.f32 %v350, %v392
        %v399 = vadd.f32 %v351, %v393
        %v400 = vadd.f32 %v352, %v394
        %v401 = vadd.f32 %v353, %v395
        %vm402 = vcmask 523264
        %v403 = vsel %vm402, %v396, inf
        %v404 = vsel %vm402, %v397, inf
        %v405 = vsel %vm402, %v398, inf
        %v406 = vsel %vm402, %v399, inf
        %v407 = vsel %vm402, %v400, inf
        %v408 = vmin.f32 %v403, %v407
        %v409 = vsel %vm402, %v401, inf
        %v410 = vmin.f32 %v404, %v409
        %v411 = vmin.f32 %v408, %v410
        %v412 = vmin.f32 %v405, %v406
        %v413 = vmin.f32 %v411, %v412
        %v414 = vrot.slane %v413, 4
        %v415 = vmin.f32 %v413, %v414
        %v416 = vrot.slane %v415, 2
        %v417 = vmin.f32 %v415, %v416
        %v418 = vrot.slane %v417, 1
        %v419 = vmin.f32 %v417, %v418
        %v420 = vld [vmem:[%s220] sm:$0x1]
        %s421 = scalar_select %p264, 1, 0
        %v422 = vstv %s421
        %vm423 = vcmp.eq.s32.totalorder %v422, 1
        %v424 = vsel %vm423, 3e+38, %v420
        %v425 = vmin.f32 %v424, %v419
        %p426 = scmp.gt.s32.totalorder %s284, 0
        %s427 = scalar_select %p426, 1, 0
        %v428 = vstv %s427
        %vm429 = vcmp.eq.s32.totalorder %v428, 1
        %vm430 = vmand %vm286, %vm429
        %v431 = vrsqrt.pop %v425
        %v432 = vmul.f32 %v425, %v431
        %vm433 = vcmp.eq.f32.partialorder %v425, inf
        %v434 = vsel %vm433, %v425, %v432
        %vm435 = vcmp.eq.f32.partialorder %v425, 0.0
        %v436 = vand.u32 %v425, 2147483648
        %v437 = vsel %vm435, %v436, %v434
        %v438 = vsel %vm430, %v437, 0.0
        %v439 = vsel %vm423, %v438, %v425
        %vm440 = vcmask 516096
        %441 = vst.msk [vmem:[%s220] sm:$0x1] %vm440, %v439
        %442 = vmin.xlane.f32.xlu0 %v403
        %v443 = vpop.xlane.xlu0 %442
        %444 = vmin.xlane.f32.xlu0 %v404
        %v445 = vpop.xlane.xlu0 %444
        %446 = vmin.xlane.f32.xlu0 %v405
        %v447 = vpop.xlane.xlu0 %446
        %448 = vmin.xlane.f32.xlu0 %v406
        %v449 = vpop.xlane.xlu0 %448
        %450 = vmin.xlane.f32.xlu0 %v407
        %v451 = vpop.xlane.xlu0 %450
        %452 = vmin.xlane.f32.xlu0 %v409
        %v453 = vpop.xlane.xlu0 %452
        %p454 = scmp.gt.s32.totalorder %s283, 0
        %s455 = scalar_select %p454, 1, 0
        %v456 = vstv %s455
        %vm457 = vcmp.eq.s32.totalorder %v456, 1
        %vm458 = vmand %vm288, %vm457
        %vm459 = vmand %vm289, %vm457
        %vm460 = vmand %vm290, %vm457
        %vm461 = vmand %vm291, %vm457
        %vm462 = vmand %vm292, %vm457
        %vm463 = vmand %vm293, %vm457
        %v464 = vrsqrt.pop %v443
        %v465 = vmul.f32 %v443, %v464
        %vm466 = vcmp.eq.f32.partialorder %v443, inf
        %v467 = vsel %vm466, %v443, %v465
        %vm468 = vcmp.eq.f32.partialorder %v443, 0.0
        %v469 = vand.u32 %v443, 2147483648
        %v470 = vsel %vm468, %v469, %v467
        %v471 = vrsqrt.pop %v445
        %v472 = vmul.f32 %v445, %v471
        %vm473 = vcmp.eq.f32.partialorder %v445, inf
        %v474 = vsel %vm473, %v445, %v472
        %vm475 = vcmp.eq.f32.partialorder %v445, 0.0
        %v476 = vand.u32 %v445, 2147483648
        %v477 = vsel %vm475, %v476, %v474
        %v478 = vrsqrt.pop %v447
        %v479 = vmul.f32 %v447, %v478
        %vm480 = vcmp.eq.f32.partialorder %v447, inf
        %v481 = vsel %vm480, %v447, %v479
        %vm482 = vcmp.eq.f32.partialorder %v447, 0.0
        %v483 = vand.u32 %v447, 2147483648
        %v484 = vsel %vm482, %v483, %v481
        %v485 = vrsqrt.pop %v449
        %v486 = vmul.f32 %v449, %v485
        %vm487 = vcmp.eq.f32.partialorder %v449, inf
        %v488 = vsel %vm487, %v449, %v486
        %vm489 = vcmp.eq.f32.partialorder %v449, 0.0
        %v490 = vand.u32 %v449, 2147483648
        %v491 = vsel %vm489, %v490, %v488
        %v492 = vrsqrt.pop %v451
        %v493 = vmul.f32 %v451, %v492
        %vm494 = vcmp.eq.f32.partialorder %v451, inf
        %v495 = vsel %vm494, %v451, %v493
        %vm496 = vcmp.eq.f32.partialorder %v451, 0.0
        %v497 = vand.u32 %v451, 2147483648
        %v498 = vsel %vm496, %v497, %v495
        %v499 = vrsqrt.pop %v453
        %v500 = vmul.f32 %v453, %v499
        %vm501 = vcmp.eq.f32.partialorder %v453, inf
        %v502 = vsel %vm501, %v453, %v500
        %vm503 = vcmp.eq.f32.partialorder %v453, 0.0
        %v504 = vand.u32 %v453, 2147483648
        %v505 = vsel %vm503, %v504, %v502
        %v506 = vsel %vm458, %v470, 0.0
        %v507 = vsel %vm459, %v477, 0.0
        %v508 = vsel %vm460, %v484, 0.0
        %v509 = vsel %vm461, %v491, 0.0
        %v510 = vsel %vm462, %v498, 0.0
        %v511 = vsel %vm463, %v505, 0.0
        %vm512 = vcmask 7168
        %513 = vst.msk [vmem:[%s261] sm:$0xff] %vm512, %v506
        %514 = vst.msk [vmem:[%s261 + $0x8] sm:$0xff] %vm512, %v507
        %515 = vst.msk [vmem:[%s261 + $0x10] sm:$0xff] %vm512, %v508
        %516 = vst.msk [vmem:[%s261 + $0x18] sm:$0xff] %vm512, %v509
        %517 = vst.msk [vmem:[%s261 + $0x20] sm:$0xff] %vm512, %v510
        %518 = vst.msk [vmem:[%s261 + $0x28] sm:$0xff] %vm512, %v511
        %s519 = sadd.s32 %s265, 1
        %s520 = sld [smem:[#allocation3 + %s519]]
        %s521 = sld [smem:[#allocation4 + %s519]]
        %v522 = vstv %s520
        %vm523 = vcmp.lt.s32.totalorder %v267, %v522
        %v524 = vstv %s521
        %vm525 = vcmp.lt.s32.totalorder %v277, %v524
        %vm526 = vcmp.lt.s32.totalorder %v278, %v524
        %vm527 = vcmp.lt.s32.totalorder %v279, %v524
        %vm528 = vcmp.lt.s32.totalorder %v280, %v524
        %vm529 = vcmp.lt.s32.totalorder %v281, %v524
        %vm530 = vcmp.lt.s32.totalorder %v282, %v524
        %s531 = scalar_lea.vmem %s237, 2
        %v532 = vld [vmem:[%s531] sm:$0x1]
        %v533 = vsel %vm523, %v532, 1e+18
        %s534 = scalar_lea.vmem %s248, 48
        %v535 = vld [vmem:[%s534] sm:$0xff]
        %v536 = vld [vmem:[%s534 + $0x8] sm:$0xff]
        %v537 = vld [vmem:[%s534 + $0x10] sm:$0xff]
        %v538 = vld [vmem:[%s534 + $0x18] sm:$0xff]
        %v539 = vld [vmem:[%s534 + $0x20] sm:$0xff]
        %v540 = vld [vmem:[%s534 + $0x28] sm:$0xff]
        %v541 = vsel %vm525, %v535, -1e+18
        %v542 = vsel %vm526, %v536, -1e+18
        %v543 = vsel %vm527, %v537, -1e+18
        %v544 = vsel %vm528, %v538, -1e+18
        %v545 = vsel %vm529, %v539, -1e+18
        %v546 = vsel %vm530, %v540, -1e+18
        %548 = vset.pattern.permute.xlu0 0
        %549 = vperm.xlu0 %548, %v541
        %v550 = vpop.permute.xlu0 %549
        %553 = vset.pattern.permute.xlu0 0
        %554 = vperm.xlu0 %553, %v542
        %v555 = vpop.permute.xlu0 %554
        %558 = vset.pattern.permute.xlu0 0
        %559 = vperm.xlu0 %558, %v543
        %v560 = vpop.permute.xlu0 %559
        %563 = vset.pattern.permute.xlu0 0
        %564 = vperm.xlu0 %563, %v544
        %v565 = vpop.permute.xlu0 %564
        %568 = vset.pattern.permute.xlu0 0
        %569 = vperm.xlu0 %568, %v545
        %v570 = vpop.permute.xlu0 %569
        %573 = vset.pattern.permute.xlu0 0
        %574 = vperm.xlu0 %573, %v546
        %v575 = vpop.permute.xlu0 %574
        %v577 = vlaneseq
        %v578 = vshrl.u32 %v577, 7
        %v579 = vsub.s32 0, %v578
        %v580 = vrot.slane %v533, %v579
        %v581 = vsub.f32 %v550, %v580
        %v582 = vsub.f32 %v555, %v580
        %v583 = vsub.f32 %v560, %v580
        %v584 = vsub.f32 %v565, %v580
        %v585 = vsub.f32 %v570, %v580
        %v586 = vsub.f32 %v575, %v580
        %v587 = vmul.f32 %v581, %v581
        %v588 = vmul.f32 %v582, %v582
        %v589 = vmul.f32 %v583, %v583
        %v590 = vmul.f32 %v584, %v584
        %v591 = vmul.f32 %v585, %v585
        %v592 = vmul.f32 %v586, %v586
        %v593 = vld [vmem:[%s531 + $0x1] sm:$0x1]
        %v594 = vsel %vm523, %v593, 1e+18
        %595 = vset.pattern.permute.xlu0 1
        %596 = vperm.xlu0 %595, %v541
        %v597 = vpop.permute.xlu0 %596
        %599 = vset.pattern.permute.xlu0 1
        %600 = vperm.xlu0 %599, %v542
        %v601 = vpop.permute.xlu0 %600
        %603 = vset.pattern.permute.xlu0 1
        %604 = vperm.xlu0 %603, %v543
        %v605 = vpop.permute.xlu0 %604
        %607 = vset.pattern.permute.xlu0 1
        %608 = vperm.xlu0 %607, %v544
        %v609 = vpop.permute.xlu0 %608
        %611 = vset.pattern.permute.xlu0 1
        %612 = vperm.xlu0 %611, %v545
        %v613 = vpop.permute.xlu0 %612
        %615 = vset.pattern.permute.xlu0 1
        %616 = vperm.xlu0 %615, %v546
        %v617 = vpop.permute.xlu0 %616
        %v619 = vlaneseq
        %v620 = vshrl.u32 %v619, 7
        %v621 = vsub.s32 0, %v620
        %v622 = vrot.slane %v594, %v621
        %v623 = vsub.f32 %v597, %v622
        %v624 = vsub.f32 %v601, %v622
        %v625 = vsub.f32 %v605, %v622
        %v626 = vsub.f32 %v609, %v622
        %v627 = vsub.f32 %v613, %v622
        %v628 = vsub.f32 %v617, %v622
        %v629 = vmul.f32 %v623, %v623
        %v630 = vmul.f32 %v624, %v624
        %v631 = vmul.f32 %v625, %v625
        %v632 = vmul.f32 %v626, %v626
        %v633 = vmul.f32 %v627, %v627
        %v634 = vmul.f32 %v628, %v628
        %v635 = vadd.f32 %v587, %v629
        %v636 = vadd.f32 %v588, %v630
        %v637 = vadd.f32 %v589, %v631
        %v638 = vadd.f32 %v590, %v632
        %v639 = vadd.f32 %v591, %v633
        %v640 = vadd.f32 %v592, %v634
        %v641 = vsel %vm402, %v635, inf
        %v642 = vsel %vm402, %v636, inf
        %v643 = vsel %vm402, %v637, inf
        %v644 = vsel %vm402, %v638, inf
        %v645 = vsel %vm402, %v639, inf
        %v646 = vmin.f32 %v641, %v645
        %v647 = vsel %vm402, %v640, inf
        %v648 = vmin.f32 %v642, %v647
        %v649 = vmin.f32 %v646, %v648
        %v650 = vmin.f32 %v643, %v644
        %v651 = vmin.f32 %v649, %v650
        %v652 = vrot.slane %v651, 4
        %v653 = vmin.f32 %v651, %v652
        %v654 = vrot.slane %v653, 2
        %v655 = vmin.f32 %v653, %v654
        %v656 = vrot.slane %v655, 1
        %v657 = vmin.f32 %v655, %v656
        %s658 = scalar_lea.vmem %s220, 1 [#allocation5]
        %v659 = vld [vmem:[%s658] sm:$0x1]
        %v660 = vsel %vm423, 3e+38, %v659
        %v661 = vmin.f32 %v660, %v657
        %p662 = scmp.gt.s32.totalorder %s521, 0
        %s663 = scalar_select %p662, 1, 0
        %v664 = vstv %s663
        %vm665 = vcmp.eq.s32.totalorder %v664, 1
        %vm666 = vmand %vm523, %vm665
        %v667 = vrsqrt.pop %v661
        %v668 = vmul.f32 %v661, %v667
        %vm669 = vcmp.eq.f32.partialorder %v661, inf
        %v670 = vsel %vm669, %v661, %v668
        %vm671 = vcmp.eq.f32.partialorder %v661, 0.0
        %v672 = vand.u32 %v661, 2147483648
        %v673 = vsel %vm671, %v672, %v670
        %v674 = vsel %vm666, %v673, 0.0
        %v675 = vsel %vm423, %v674, %v661
        %676 = vst.msk [vmem:[%s658] sm:$0x1] %vm440, %v675
        %677 = vmin.xlane.f32.xlu0 %v641
        %v678 = vpop.xlane.xlu0 %677
        %679 = vmin.xlane.f32.xlu0 %v642
        %v680 = vpop.xlane.xlu0 %679
        %681 = vmin.xlane.f32.xlu0 %v643
        %v682 = vpop.xlane.xlu0 %681
        %683 = vmin.xlane.f32.xlu0 %v644
        %v684 = vpop.xlane.xlu0 %683
        %685 = vmin.xlane.f32.xlu0 %v645
        %v686 = vpop.xlane.xlu0 %685
        %687 = vmin.xlane.f32.xlu0 %v647
        %v688 = vpop.xlane.xlu0 %687
        %p689 = scmp.gt.s32.totalorder %s520, 0
        %s690 = scalar_select %p689, 1, 0
        %v691 = vstv %s690
        %vm692 = vcmp.eq.s32.totalorder %v691, 1
        %vm693 = vmand %vm525, %vm692
        %vm694 = vmand %vm526, %vm692
        %vm695 = vmand %vm527, %vm692
        %vm696 = vmand %vm528, %vm692
        %vm697 = vmand %vm529, %vm692
        %vm698 = vmand %vm530, %vm692
        %v699 = vrsqrt.pop %v678
        %v700 = vmul.f32 %v678, %v699
        %vm701 = vcmp.eq.f32.partialorder %v678, inf
        %v702 = vsel %vm701, %v678, %v700
        %vm703 = vcmp.eq.f32.partialorder %v678, 0.0
        %v704 = vand.u32 %v678, 2147483648
        %v705 = vsel %vm703, %v704, %v702
        %v706 = vrsqrt.pop %v680
        %v707 = vmul.f32 %v680, %v706
        %vm708 = vcmp.eq.f32.partialorder %v680, inf
        %v709 = vsel %vm708, %v680, %v707
        %vm710 = vcmp.eq.f32.partialorder %v680, 0.0
        %v711 = vand.u32 %v680, 2147483648
        %v712 = vsel %vm710, %v711, %v709
        %v713 = vrsqrt.pop %v682
        %v714 = vmul.f32 %v682, %v713
        %vm715 = vcmp.eq.f32.partialorder %v682, inf
        %v716 = vsel %vm715, %v682, %v714
        %vm717 = vcmp.eq.f32.partialorder %v682, 0.0
        %v718 = vand.u32 %v682, 2147483648
        %v719 = vsel %vm717, %v718, %v716
        %v720 = vrsqrt.pop %v684
        %v721 = vmul.f32 %v684, %v720
        %vm722 = vcmp.eq.f32.partialorder %v684, inf
        %v723 = vsel %vm722, %v684, %v721
        %vm724 = vcmp.eq.f32.partialorder %v684, 0.0
        %v725 = vand.u32 %v684, 2147483648
        %v726 = vsel %vm724, %v725, %v723
        %v727 = vrsqrt.pop %v686
        %v728 = vmul.f32 %v686, %v727
        %vm729 = vcmp.eq.f32.partialorder %v686, inf
        %v730 = vsel %vm729, %v686, %v728
        %vm731 = vcmp.eq.f32.partialorder %v686, 0.0
        %v732 = vand.u32 %v686, 2147483648
        %v733 = vsel %vm731, %v732, %v730
        %v734 = vrsqrt.pop %v688
        %v735 = vmul.f32 %v688, %v734
        %vm736 = vcmp.eq.f32.partialorder %v688, inf
        %v737 = vsel %vm736, %v688, %v735
        %vm738 = vcmp.eq.f32.partialorder %v688, 0.0
        %v739 = vand.u32 %v688, 2147483648
        %v740 = vsel %vm738, %v739, %v737
        %v741 = vsel %vm693, %v705, 0.0
        %v742 = vsel %vm694, %v712, 0.0
        %v743 = vsel %vm695, %v719, 0.0
        %v744 = vsel %vm696, %v726, 0.0
        %v745 = vsel %vm697, %v733, 0.0
        %v746 = vsel %vm698, %v740, 0.0
        %s747 = scalar_lea.vmem %s261, 48
        %748 = vst.msk [vmem:[%s747] sm:$0xff] %vm512, %v741
        %749 = vst.msk [vmem:[%s747 + $0x8] sm:$0xff] %vm512, %v742
        %750 = vst.msk [vmem:[%s747 + $0x10] sm:$0xff] %vm512, %v743
        %751 = vst.msk [vmem:[%s747 + $0x18] sm:$0xff] %vm512, %v744
        %752 = vst.msk [vmem:[%s747 + $0x20] sm:$0xff] %vm512, %v745
        %753 = vst.msk [vmem:[%s747 + $0x28] sm:$0xff] %vm512, %v746
        %s754 = sand.u32 %s104, 1
        %s755 = scalar_lea.sflag [#allocation6], %s754
        %s756 = sand.u32 %s104, 1
        %s757 = smul.addr %s756, 2
        %s758 = scalar_lea.vmem [#allocation5], %s757
        %s759 = smul.u32 2, %s34
        %s760 = smul.u32 6, %s35
        %p761 = scmp.lt.s32.totalorder %s759, 3
        %s762 = scalar_select %p761, %s759, 3
        %p763 = scmp.lt.s32.totalorder %s760, 5
        %s764 = scalar_select %p763, %s760, 5
        %s765 = smul.addr %s762, 6
        %s766 = sadd.s32 %s764, %s765
        %s767 = smul.addr %s766, 8
        %s768 = scalar_lea.vmem %s5, %s767
        // Predicated region
        $region29: #{tpu_custom_call.1} parent=27 // pred_check
          %p769 = pneg %p114
        $region30: #{tpu_custom_call.1} parent=27 // pred_check_branch
          %771 = sbr.rel (%p769) target = $region32
        $region31: #{tpu_custom_call.1} parent=27 // pred_region
          %s772 = smul.u32 2, %s34
          %s774 = ssub.s32 32, 32
          %775 = vsyncadd %s755, %s774
          %s776 = smul.addr %s772, 16
          %s777 = scalar_lea.hbm %s4, %s776
          %s778 = sshll.u32 %s758, 4
          %s779 = int_to_ptr.vmem [resolvable:$true] %s778
          %784 = dma.vmem_to_hbm [thread:$0]  %s779, 32, %s777, %s755, 16, 16, 1
        $region32: #{tpu_custom_call.1} parent=27 // pred_fallthru
          _
        // Predicated region
        $region33: #{tpu_custom_call.1} parent=27 // pred_check
          %p785 = pneg %p142
        $region34: #{tpu_custom_call.1} parent=27 // pred_check_branch
          %787 = sbr.rel (%p785) target = $region36
        $region35: #{tpu_custom_call.1} parent=27 // pred_region
          %s788 = smul.u32 2, %s34
          %s789 = smul.u32 6, %s35
        $region36: #{tpu_custom_call.1} parent=27 // pred_fallthru
          _
      $region28: #{tpu_custom_call.1} parent=5 // pred_fallthru
        _
      %p790 = scmp.le.s32.totalorder 2, %s25
      // Predicated region
      $region37: #{tpu_custom_call.1} parent=5 // pred_check
        %p791 = pneg %p790
      $region38: #{tpu_custom_call.1} parent=5 // pred_check_branch
        %793 = sbr.rel (%p791) target = $region40
      $region39: #{tpu_custom_call.1} parent=5 // pred_region
        %s794 = ssub.s32 %s25, 2
        // Predicated region
        $region41: #{tpu_custom_call.1} parent=39 // pred_check
          %p795 = pneg %p120
        $region42: #{tpu_custom_call.1} parent=39 // pred_check_branch
          %797 = sbr.rel (%p795) target = $region44
        $region43: #{tpu_custom_call.1} parent=39 // pred_region
          %s798 = sand.u32 %s105, 1
          %s799 = scalar_lea.sflag [#allocation6], %s798
          %s800 = sand.u32 %s105, 1
          %s801 = smul.addr %s800, 2
          %s802 = scalar_lea.vmem [#allocation5], %s801
          %803 = dma.done %s799, 32
        $region44: #{tpu_custom_call.1} parent=39 // pred_fallthru
          _
        // Predicated region
        $region45: #{tpu_custom_call.1} parent=39 // pred_check
          %p804 = pneg %p148
        $region46: #{tpu_custom_call.1} parent=39 // pred_check_branch
          %806 = sbr.rel (%p804) target = $region48
        $region47: #{tpu_custom_call.1} parent=39 // pred_region
          %s807 = smul.u32 2, %s36
          %s808 = smul.u32 6, %s37
          %p809 = scmp.lt.s32.totalorder %s807, 3
          %s810 = scalar_select %p809, %s807, 3
          %p811 = scmp.lt.s32.totalorder %s808, 5
          %s812 = scalar_select %p811, %s808, 5
          %s813 = smul.addr %s810, 6
          %s814 = sadd.s32 %s812, %s813
          %s815 = smul.addr %s814, 8
          %s816 = scalar_lea.vmem %s5, %s815
        $region48: #{tpu_custom_call.1} parent=39 // pred_fallthru
          _
      $region40: #{tpu_custom_call.1} parent=5 // pred_fallthru
        _
    $region6: #{tpu_custom_call.1} parent=1 // loop_footer
      %s29 = sadd.s32 1, %s25
    $region7: #{tpu_custom_call.1} parent=1 // loop_footer_branch
      %24 = sbr.rel target = $region3
    $region8: #{tpu_custom_call.1} parent=1 // loop_exit
      _
    %817 = vsyncpa [#allocation6], 1
    %s818 = scalar_lea.sflag [#allocation6], 1
    %819 = vsyncpa %s818, 1

</llo_original>
